<compile_context>
chip_gen: v7x
topology: tpu7x:2x2x1
jax: 0.10.0
libtpu: 0.0.40
codegen_flags: <defaults>
</compile_context>

<pallas_src>
import functools

import jax
import jax.numpy as jnp
from jax.experimental import pallas as pl
from jax.experimental.pallas import tpu as pltpu

NEG_SLOPE = 0.01  # nn.LeakyReLU default negative_slope


def critic_kernel(feat_ref, qoe_ref, w1_ref, b1_ref, w2_ref, b2_ref, out_ref):
    # fc: Linear(feature_dim, hidden_dim) on the MXU, f32 accumulate.
    h = jnp.dot(feat_ref[...], w1_ref[...], preferred_element_type=jnp.float32)
    # Bias + LeakyReLU + residual add of qoe_features, f32 on the VPU.
    h = h + b1_ref[...]
    h = jnp.where(h > 0, h, NEG_SLOPE * h)
    s = h + qoe_ref[...].astype(jnp.float32)
    # out: Linear(hidden_dim, 1) as (1,H) x (TB,H)^T -> (1,TB) on the MXU;
    # result is already in the lane-dense output layout.  b2 is an SMEM scalar.
    logits = jax.lax.dot_general(
        w2_ref[...], s,
        dimension_numbers=(((1,), (1,)), ((), ())),
        preferred_element_type=jnp.float32)          # (1, TB)
    out_ref[...] = (logits + b2_ref[0]).astype(out_ref.dtype)


def critic_forward(features, qoe_features, w1, b1, w2, b2, *,
                   tb=1024, single_tile_max=2048,
                   compute_dtype=jnp.float32):
    """features:(B,F) qoe:(B,H) w1:(F,H) b1:(1,H) w2:(H,1) b2:(1,1) -> (B,1)."""
    B, feature_dim = features.shape
    hidden_dim = w1.shape[1]
    assert qoe_features.shape == (B, hidden_dim)

    # Optional reduced-precision activation/weight streams (v6e/v7x);
    # accumulation stays f32 inside the kernel.
    feats = features.astype(compute_dtype)
    qoe = qoe_features.astype(compute_dtype)
    w1c = w1.astype(compute_dtype)

    # Tile selection: single exact-size tile for small B (no padding, no
    # per-step overhead); big lane-aligned tiles otherwise.
    if B <= single_tile_max:
        tb = B
        num_tiles = 1
    else:
        assert tb % 128 == 0, "tb must be a multiple of 128 for lane-dense output"
        num_tiles = pl.cdiv(B, tb)
    b_pad = num_tiles * tb  # only the cheap output slab is padded

    w2_row = w2.reshape(1, hidden_dim).astype(jnp.float32)   # (1, H)
    b1_row = b1.reshape(1, hidden_dim).astype(jnp.float32)   # (1, H)
    b2_scalar = b2.reshape((1,)).astype(jnp.float32)          # SMEM scalar

    # Scoped-VMEM budget from the actual footprint (double-buffered streams),
    # with headroom; clamped to be safe on every generation (v5e default is
    # only 16 MiB scoped, v7x physical is 64 MiB).
    act_bytes = jnp.dtype(compute_dtype).itemsize
    vmem_est = (2 * tb * (feature_dim + hidden_dim) * act_bytes   # feats + qoe
                + 2 * tb * 4                                      # output slab
                + feature_dim * hidden_dim * act_bytes            # w1
                + 2 * hidden_dim * 4                              # b1, w2
                + (4 << 20))                                      # headroom
    vmem_limit = min(max(int(vmem_est), 16 << 20), 48 << 20)

    out = pl.pallas_call(
        critic_kernel,
        out_shape=jax.ShapeDtypeStruct((1, b_pad), jnp.float32),
        grid=(num_tiles,),
        in_specs=[
            # Activations: tiled over the batch (double-buffered by Pallas).
            # No wrapper padding: the uneven last block is handled by Pallas,
            # garbage rows only produce garbage output columns (sliced off).
            pl.BlockSpec((tb, feature_dim), lambda i: (i, 0)),
            pl.BlockSpec((tb, hidden_dim), lambda i: (i, 0)),
            # Parameters: constant block index -> VMEM-resident across steps.
            pl.BlockSpec((feature_dim, hidden_dim), lambda i: (0, 0)),
            pl.BlockSpec((1, hidden_dim), lambda i: (0, 0)),
            pl.BlockSpec((1, hidden_dim), lambda i: (0, 0)),
            # b2: scalar in SMEM.
            pl.BlockSpec(memory_space=pltpu.MemorySpace.SMEM),
        ],
        out_specs=pl.BlockSpec((1, tb), lambda i: (0, i)),
        compiler_params=pltpu.CompilerParams(
            dimension_semantics=("parallel",),
            vmem_limit_bytes=vmem_limit,
        ),
    )(feats, qoe, w1c, b1_row, w2_row, b2_scalar)

    return out[0, :B].reshape(B, 1)


def reference_forward(features, qoe_features, w1, b1, w2, b2):
    h = features @ w1 + b1
    h = jnp.where(h > 0, h, NEG_SLOPE * h)
    return (h + qoe_features) @ w2 + b2


if __name__ == "__main__":
    feature_dim = 32
    hidden_dim = 32

    key = jax.random.PRNGKey(0)
    k_feat, k_qoe, k_w1, k_b1, k_w2, k_b2 = jax.random.split(key, 6)

    # deterministic parameter init (Linear layers: fc and out)
    w1 = jax.random.normal(k_w1, (feature_dim, hidden_dim), dtype=jnp.float32) * 0.1
    b1 = jax.random.normal(k_b1, (1, hidden_dim), dtype=jnp.float32) * 0.1
    w2 = jax.random.normal(k_w2, (hidden_dim, 1), dtype=jnp.float32) * 0.1
    b2 = jax.random.normal(k_b2, (1, 1), dtype=jnp.float32) * 0.1

    # --- Test 1: small batch -> single exact-size tile (no padding) ---------
    B = 8
    features = jax.random.normal(k_feat, (B, feature_dim), dtype=jnp.float32)
    qoe_features = jax.random.normal(k_qoe, (B, hidden_dim), dtype=jnp.float32)

    fwd = jax.jit(functools.partial(critic_forward, compute_dtype=jnp.float32))
    logits = jax.block_until_ready(fwd(features, qoe_features, w1, b1, w2, b2))

    ref = reference_forward(features, qoe_features, w1, b1, w2, b2)
    assert logits.shape == (B, 1)
    assert jnp.allclose(logits, ref, atol=1e-5, rtol=1e-5), "mismatch (single tile)"

    # --- Test 2: multi-tile path with uneven last block (no wrapper pad) ----
    B2 = 200
    features2 = jax.random.normal(k_feat, (B2, feature_dim), dtype=jnp.float32)
    qoe_features2 = jax.random.normal(k_qoe, (B2, hidden_dim), dtype=jnp.float32)

    fwd2 = jax.jit(functools.partial(critic_forward, tb=128, single_tile_max=64,
                                     compute_dtype=jnp.float32))
    logits2 = jax.block_until_ready(fwd2(features2, qoe_features2, w1, b1, w2, b2))

    ref2 = reference_forward(features2, qoe_features2, w1, b1, w2, b2)
    assert logits2.shape == (B2, 1)
    assert jnp.allclose(logits2, ref2, atol=1e-5, rtol=1e-5), "mismatch (multi tile)"

    print("KERNEL_OK")
</pallas_src>

<mosaic_0001>
module attributes {stable_mosaic.version = 11 : i64} {
  func.func @critic_kernel(%arg0: i32, %arg1: memref<8x32xf32, #tpu.memory_space<vmem>>, %arg2: memref<8x32xf32, #tpu.memory_space<vmem>>, %arg3: memref<32x32xf32, #tpu.memory_space<vmem>>, %arg4: memref<1x32xf32, #tpu.memory_space<vmem>>, %arg5: memref<1x32xf32, #tpu.memory_space<vmem>>, %arg6: memref<1xf32, #tpu.memory_space<smem>>, %arg7: memref<1x8xf32, #tpu.memory_space<vmem>>) attributes {dimension_semantics = [#tpu.dimension_semantics<parallel>], iteration_bounds = array<i64: 1>, scalar_prefetch = 0 : i64, scratch_operands = 0 : i64, tpu.core_type = #tpu.core_type<tc>, window_params = [{transform_indices = @transform_0, window_bounds = array<i64: 8, 32>}, {transform_indices = @transform_1, window_bounds = array<i64: 8, 32>}, {pipeline_mode = #tpu.pipeline_mode<synchronous>, transform_indices = @transform_2, window_bounds = array<i64: 32, 32>}, {pipeline_mode = #tpu.pipeline_mode<synchronous>, transform_indices = @transform_3, window_bounds = array<i64: 1, 32>}, {pipeline_mode = #tpu.pipeline_mode<synchronous>, transform_indices = @transform_4, window_bounds = array<i64: 1, 32>}, {transform_indices = @transform_5, window_bounds = array<i64: 1>}, {transform_indices = @transform_6, window_bounds = array<i64: 1, 8>}]} {
    %c0 = arith.constant 0 : index
    %c0_0 = arith.constant 0 : index
    %0 = vector.load %arg1[%c0, %c0_0] : memref<8x32xf32, #tpu.memory_space<vmem>>, vector<8x32xf32>
    %c0_1 = arith.constant 0 : index
    %c0_2 = arith.constant 0 : index
    %1 = vector.load %arg3[%c0_1, %c0_2] : memref<32x32xf32, #tpu.memory_space<vmem>>, vector<32x32xf32>
    %cst = arith.constant dense<0.000000e+00> : vector<8x32xf32>
    %2 = tpu.matmul %0, %1, %cst {dimension_numbers = #tpu.dot_dimension_numbers<[1], [0], [0], [1], [0, 0, 1, 1], [], []>} : vector<8x32xf32>, vector<32x32xf32>, vector<8x32xf32> -> vector<8x32xf32>
    %c0_3 = arith.constant 0 : index
    %c0_4 = arith.constant 0 : index
    %3 = vector.load %arg4[%c0_3, %c0_4] : memref<1x32xf32, #tpu.memory_space<vmem>>, vector<1x32xf32>
    %4 = vector.broadcast %3 : vector<1x32xf32> to vector<8x32xf32>
    %5 = arith.addf %2, %4 : vector<8x32xf32>
    %cst_5 = arith.constant 0.000000e+00 : f32
    %6 = vector.broadcast %cst_5 : f32 to vector<8x32xf32>
    %7 = arith.cmpf ogt, %5, %6 : vector<8x32xf32>
    %cst_6 = arith.constant 0.00999999977 : f32
    %8 = vector.broadcast %cst_6 : f32 to vector<8x32xf32>
    %9 = arith.mulf %8, %5 : vector<8x32xf32>
    %10 = arith.select %7, %5, %9 : vector<8x32xi1>, vector<8x32xf32>
    %c0_7 = arith.constant 0 : index
    %c0_8 = arith.constant 0 : index
    %11 = vector.load %arg2[%c0_7, %c0_8] : memref<8x32xf32, #tpu.memory_space<vmem>>, vector<8x32xf32>
    %12 = arith.addf %10, %11 : vector<8x32xf32>
    %c0_9 = arith.constant 0 : index
    %c0_10 = arith.constant 0 : index
    %13 = vector.load %arg5[%c0_9, %c0_10] : memref<1x32xf32, #tpu.memory_space<vmem>>, vector<1x32xf32>
    %cst_11 = arith.constant dense<0.000000e+00> : vector<1x8xf32>
    %14 = tpu.matmul %13, %12, %cst_11 {dimension_numbers = #tpu.dot_dimension_numbers<[1], [1], [0], [0], [0, 0, 1, 0], [], []>} : vector<1x32xf32>, vector<8x32xf32>, vector<1x8xf32> -> vector<1x8xf32>
    %c0_12 = arith.constant 0 : index
    %15 = memref.load %arg6[%c0_12] : memref<1xf32, #tpu.memory_space<smem>>
    %16 = vector.broadcast %15 : f32 to vector<1x8xf32>
    %17 = arith.addf %14, %16 : vector<1x8xf32>
    %c0_13 = arith.constant 0 : index
    %c0_14 = arith.constant 0 : index
    %18 = vector.load %arg7[%c0_13, %c0_14] : memref<1x8xf32, #tpu.memory_space<vmem>>, vector<1x8xf32>
    tpu.vector_store %arg7[%c0_13, %c0_14], %17 {strides = array<i32>} : memref<1x8xf32, #tpu.memory_space<vmem>>, vector<1x8xf32>,
    return
  }
  func.func @transform_0(%arg0: i32) -> (i32, i32) {
    %c0_i32 = arith.constant 0 : i32
    %c0_i32_0 = arith.constant 0 : i32
    return %arg0, %c0_i32 : i32, i32
  }
  func.func @transform_1(%arg0: i32) -> (i32, i32) {
    %c0_i32 = arith.constant 0 : i32
    %c0_i32_0 = arith.constant 0 : i32
    return %arg0, %c0_i32 : i32, i32
  }
  func.func @transform_2(%arg0: i32) -> (i32, i32) {
    %c0_i32 = arith.constant 0 : i32
    %c0_i32_0 = arith.constant 0 : i32
    %c0_i32_1 = arith.constant 0 : i32
    return %c0_i32, %c0_i32_0 : i32, i32
  }
  func.func @transform_3(%arg0: i32) -> (i32, i32) {
    %c0_i32 = arith.constant 0 : i32
    %c0_i32_0 = arith.constant 0 : i32
    %c0_i32_1 = arith.constant 0 : i32
    return %c0_i32, %c0_i32_0 : i32, i32
  }
  func.func @transform_4(%arg0: i32) -> (i32, i32) {
    %c0_i32 = arith.constant 0 : i32
    %c0_i32_0 = arith.constant 0 : i32
    %c0_i32_1 = arith.constant 0 : i32
    return %c0_i32, %c0_i32_0 : i32, i32
  }
  func.func @transform_5(%arg0: i32) -> i32 {
    %c0_i32 = arith.constant 0 : i32
    %c0_i32_0 = arith.constant 0 : i32
    return %c0_i32 : i32
  }
  func.func @transform_6(%arg0: i32) -> (i32, i32) {
    %c0_i32 = arith.constant 0 : i32
    %c0_i32_0 = arith.constant 0 : i32
    return %c0_i32, %arg0 : i32, i32
  }
}

</mosaic_0001>

<llo_original>
// kernel: critic_forward.1
$region0: #{critic_forward.1}
  #allocation0 [shape = 'u32[]', space=smem, size = 0x4, offset = 0x4, fixed_abs, tag = 'smem constant byte address 0x4 - core index']
  #allocation1 [shape = 'u32[144,128]{1,0:T(1,128)}', space=vmem, size = 0x12000, scoped, tag = 'internal scratch']
  #allocation2 [shape = 'f32[1]{0:T(128)S(6)}', space=smem, size = 0x200, scoped, tag = 'scoped memory for critic_forward.1']
  %s0 = inlined_call_operand.vmem [shape: f32[8,32], index: 0, kind: input, shape index: {}]
  %s1 = inlined_call_operand.hbm [shape: f32[8,32], index: 1, kind: input, shape index: {}]
  %s2 = inlined_call_operand.hbm [shape: f32[32,32], index: 2, kind: input, shape index: {}]
  %s3 = inlined_call_operand.vmem [shape: f32[1,32], index: 3, kind: input, shape index: {}]
  %s4 = inlined_call_operand.vmem [shape: f32[1,32], index: 4, kind: input, shape index: {}]
  %s5 = inlined_call_operand.<no memory space> [shape: f32[1], index: 5, kind: input, shape index: {}]
  %s6 = inlined_call_operand.hbm [shape: f32[1,8], index: 6, kind: output, shape index: {}]
  %s7 = sld [smem:[#allocation0]]
  $region42: #{critic_forward.1} parent=0
    _
  %s9 = ssub.s32 1, %s7
  %s10 = scalar_select 0, %s9, %s7
  %11 = sst [smem:[#allocation2]] %s5
  $region1: #{critic_forward.1} parent=0
    #allocation3 [shape = 'u8[4096]{0}', space=vmem, size = 0x1000, scoped, tag = 'input window, operand 1, single buffered']
    #allocation4 [shape = 's32[1]{0}', space=sflag, size = 0x4, scoped, tag = 'scoped memory for critic_forward.1']
    #allocation5 [shape = 's32[1]{0}', space=sflag, size = 0x4, scoped, tag = 'scoped memory for critic_forward.1']
    #allocation6 [shape = 'u8[16384]{0}', space=vmem, size = 0x4000, scoped, tag = 'input window, operand 2, single buffered']
    #allocation7 [shape = 's32[1]{0}', space=sflag, size = 0x4, scoped, tag = 'scoped memory for critic_forward.1']
    #allocation8 [shape = 'u8[512]{0}', space=vmem, size = 0x400, scoped, tag = 'output window, operand 0, single buffered']
    %12 = vsyncpa [#allocation4], 0
    %13 = vsyncpa [#allocation7], 0
    %14 = vsyncpa [#allocation5], 0
    // Predicated region
    $region2: #{critic_forward.1} parent=1 // pred_check
      _
    $region3: #{critic_forward.1} parent=1 // pred_check_branch
      %16 = sbr.rel (0) target = $region5
    $region4: #{critic_forward.1} parent=1 // pred_region
      _
    $region5: #{critic_forward.1} parent=1 // pred_fallthru
      _
    // Predicated region
    $region6: #{critic_forward.1} parent=1 // pred_check
      _
    $region7: #{critic_forward.1} parent=1 // pred_check_branch
      %18 = sbr.rel (0) target = $region9
    $region8: #{critic_forward.1} parent=1 // pred_region
      %s20 = ssub.s32 128, 128
      %21 = vsyncadd [#allocation4], %s20
      %s23 = sshll.u32 [#allocation3], 4
      %s24 = int_to_ptr.vmem [resolvable:$true] %s23
      %26 = dma.hbm_to_vmem [thread:$0]  %s1, 128, %s24, [#allocation4]
    $region9: #{critic_forward.1} parent=1 // pred_fallthru
      _
    // Predicated region
    $region10: #{critic_forward.1} parent=1 // pred_check
      _
    $region11: #{critic_forward.1} parent=1 // pred_check_branch
      %28 = sbr.rel (0) target = $region13
    $region12: #{critic_forward.1} parent=1 // pred_region
      %s30 = ssub.s32 512, 512
      %31 = vsyncadd [#allocation7], %s30
      %s32 = sshll.u32 [#allocation6], 4
      %s33 = int_to_ptr.vmem [resolvable:$true] %s32
      %38 = dma.hbm_to_vmem [thread:$0]  %s2, 512, %s33, [#allocation7], 128, 128, 8
    $region13: #{critic_forward.1} parent=1 // pred_fallthru
      _
    // Predicated region
    $region14: #{critic_forward.1} parent=1 // pred_check
      _
    $region15: #{critic_forward.1} parent=1 // pred_check_branch
      %40 = sbr.rel (0) target = $region17
    $region16: #{critic_forward.1} parent=1 // pred_region
      _
    $region17: #{critic_forward.1} parent=1 // pred_fallthru
      _
    // Predicated region
    $region18: #{critic_forward.1} parent=1 // pred_check
      _
    $region19: #{critic_forward.1} parent=1 // pred_check_branch
      %42 = sbr.rel (0) target = $region21
    $region20: #{critic_forward.1} parent=1 // pred_region
      _
    $region21: #{critic_forward.1} parent=1 // pred_fallthru
      _
    // Predicated region
    $region22: #{critic_forward.1} parent=1 // pred_check
      _
    $region23: #{critic_forward.1} parent=1 // pred_check_branch
      %44 = sbr.rel (0) target = $region25
    $region24: #{critic_forward.1} parent=1 // pred_region
      _
    $region25: #{critic_forward.1} parent=1 // pred_fallthru
      _
    // Predicated region
    $region26: #{critic_forward.1} parent=1 // pred_check
      _
    $region27: #{critic_forward.1} parent=1 // pred_check_branch
      %46 = sbr.rel (0) target = $region29
    $region28: #{critic_forward.1} parent=1 // pred_region
      %47 = dma.done [#allocation4], 128
    $region29: #{critic_forward.1} parent=1 // pred_fallthru
      _
    // Predicated region
    $region30: #{critic_forward.1} parent=1 // pred_check
      _
    $region31: #{critic_forward.1} parent=1 // pred_check_branch
      %49 = sbr.rel (0) target = $region33
    $region32: #{critic_forward.1} parent=1 // pred_region
      %50 = dma.done [#allocation7], 512
    $region33: #{critic_forward.1} parent=1 // pred_fallthru
      _
    %v51 = vld [vmem:[%s0] sm:$0xff]
    %v52 = vld [vmem:[#allocation6] sm:$0xff]
    %v53 = vld [vmem:[#allocation6 + $0x8] sm:$0xff]
    %v54 = vld [vmem:[#allocation6 + $0x10] sm:$0xff]
    %v55 = vld [vmem:[#allocation6 + $0x18] sm:$0xff]
    %v56 = vld [vmem:[%s3] sm:$0x1]
    %v58 = vlaneseq
    %v59 = vshrl.u32 %v58, 7
    %v60 = vsub.s32 0, %v59
    %v61 = vrot.slane %v56, %v60
    %vm63 = vcmask 261120
    %v65 = vsel %vm63, %v51, 0
    %67 = vmatprep.subr.mxu0 0.0
    %68 = vmatpush1.msra.mxu0 %v52
    %69 = vmatprep.subr.mxu0 0.0
    %70 = vmatpush1.msra.mxu0 %v53
    %71 = vmatprep.subr.mxu0 0.0
    %72 = vmatpush1.msra.mxu0 %v54
    %73 = vmatprep.subr.mxu0 0.0
    %74 = vmatpush1.msra.mxu0 %v55
    %75 = vmatprep.subr.mxu0 0.0
    %76 = vmatpush1.msra.mxu0 0.0
    %77 = vmatprep.subr.mxu0 0.0
    %78 = vmatpush1.msra.mxu0 0.0
    %79 = vmatprep.subr.mxu0 0.0
    %80 = vmatpush1.msra.mxu0 0.0
    %81 = vmatprep.subr.mxu0 0.0
    %82 = vmatpush1.msra.mxu0 0.0
    %83 = vmatprep.subr.mxu0 0.0
    %84 = vmatpush1.msra.mxu0 0.0
    %85 = vmatprep.subr.mxu0 0.0
    %86 = vmatpush1.msra.mxu0 0.0
    %87 = vmatprep.subr.mxu0 0.0
    %88 = vmatpush1.msra.mxu0 0.0
    %89 = vmatprep.subr.mxu0 0.0
    %90 = vmatpush1.msra.mxu0 0.0
    %91 = vmatprep.subr.mxu0 0.0
    %92 = vmatpush1.msra.mxu0 0.0
    %93 = vmatprep.subr.mxu0 0.0
    %94 = vmatpush1.msra.mxu0 0.0
    %95 = vmatprep.subr.mxu0 0.0
    %96 = vmatpush1.msra.mxu0 0.0
    %97 = vmatprep.subr.mxu0 0.0
    %98 = vmatpush1.msra.mxu0 0.0
    %99 = vmatprep.subr.mxu0 0.0
    %100 = vmatpush1.msra.mxu0 0.0
    %101 = vmatprep.subr.mxu0 0.0
    %102 = vmatpush1.msra.mxu0 0.0
    %103 = vmatprep.subr.mxu0 0.0
    %104 = vmatpush1.msra.mxu0 0.0
    %105 = vmatprep.subr.mxu0 0.0
    %106 = vmatpush1.msra.mxu0 0.0
    %107 = vmatprep.subr.mxu0 0.0
    %108 = vmatpush1.msra.mxu0 0.0
    %109 = vmatprep.subr.mxu0 0.0
    %110 = vmatpush1.msra.mxu0 0.0
    %111 = vmatprep.subr.mxu0 0.0
    %112 = vmatpush1.msra.mxu0 0.0
    %113 = vmatprep.subr.mxu0 0.0
    %114 = vmatpush1.msra.mxu0 0.0
    %115 = vmatprep.subr.mxu0 0.0
    %116 = vmatpush1.msra.mxu0 0.0
    %117 = vmatprep.subr.mxu0 0.0
    %118 = vmatpush1.msra.mxu0 0.0
    %119 = vmatprep.subr.mxu0 0.0
    %120 = vmatpush1.msra.mxu0 0.0
    %121 = vmatprep.subr.mxu0 0.0
    %122 = vmatpush1.msra.mxu0 0.0
    %123 = vmatprep.subr.mxu0 0.0
    %124 = vmatpush1.msra.mxu0 0.0
    %125 = vmatprep.subr.mxu0 0.0
    %126 = vmatpush1.msra.mxu0 0.0
    %127 = vmatprep.subr.mxu0 0.0
    %128 = vmatpush1.msra.mxu0 0.0
    %129 = vmatprep.subr.mxu0 0.0
    %130 = vmatpush1.msra.mxu0 0.0
    %131 = vmatprep.mubr.f32.mxu0 0.0
    %132 = vmatmul.mubr.f32.gmra.mrb[0].mxu0 %v65
    %v133 = vpop.f32.mrb[0].mxu0
    %v134 = vadd.f32 %v61, %v133
    %v135 = vpop.f32.mrb[0].mxu0
    %136 = vdwg.mxu0
    %vm137 = vcmp.gt.f32.partialorder %v134, 0.0
    %v138 = vmul.f32 %v134, 0.01
    %v139 = vsel %vm137, %v134, %v138
    %v140 = vld [vmem:[#allocation3] sm:$0xff]
    %v141 = vadd.f32 %v139, %v140
    %v142 = vld [vmem:[%s4] sm:$0x1]
    %s143 = sld [smem:[#allocation2]]
    %v144 = vstv %s143
    %v146 = vsel %vm63, %v142, 0
    %v149 = vsel %vm63, %v141, 0
    %151 = vmatprep.subr.mxu0 0.0
    %152 = vmatpush1.xpose.msra.mxu0 %v149
    %153 = vmatprep.subr.mxu0 0.0
    %154 = vmatpush1.xpose.msra.mxu0 0.0
    %155 = vmatprep.subr.mxu0 0.0
    %156 = vmatpush1.xpose.msra.mxu0 0.0
    %157 = vmatprep.subr.mxu0 0.0
    %158 = vmatpush1.xpose.msra.mxu0 0.0
    %159 = vmatprep.subr.mxu0 0.0
    %160 = vmatpush1.xpose.msra.mxu0 0.0
    %161 = vmatprep.subr.mxu0 0.0
    %162 = vmatpush1.xpose.msra.mxu0 0.0
    %163 = vmatprep.subr.mxu0 0.0
    %164 = vmatpush1.xpose.msra.mxu0 0.0
    %165 = vmatprep.subr.mxu0 0.0
    %166 = vmatpush1.xpose.msra.mxu0 0.0
    %167 = vmatprep.subr.mxu0 0.0
    %168 = vmatpush1.xpose.msra.mxu0 0.0
    %169 = vmatprep.subr.mxu0 0.0
    %170 = vmatpush1.xpose.msra.mxu0 0.0
    %171 = vmatprep.subr.mxu0 0.0
    %172 = vmatpush1.xpose.msra.mxu0 0.0
    %173 = vmatprep.subr.mxu0 0.0
    %174 = vmatpush1.xpose.msra.mxu0 0.0
    %175 = vmatprep.subr.mxu0 0.0
    %176 = vmatpush1.xpose.msra.mxu0 0.0
    %177 = vmatprep.subr.mxu0 0.0
    %178 = vmatpush1.xpose.msra.mxu0 0.0
    %179 = vmatprep.subr.mxu0 0.0
    %180 = vmatpush1.xpose.msra.mxu0 0.0
    %181 = vmatprep.subr.mxu0 0.0
    %182 = vmatpush1.xpose.msra.mxu0 0.0
    %183 = vmatprep.subr.mxu0 0.0
    %184 = vmatpush1.xpose.msra.mxu0 0.0
    %185 = vmatprep.subr.mxu0 0.0
    %186 = vmatpush1.xpose.msra.mxu0 0.0
    %187 = vmatprep.subr.mxu0 0.0
    %188 = vmatpush1.xpose.msra.mxu0 0.0
    %189 = vmatprep.subr.mxu0 0.0
    %190 = vmatpush1.xpose.msra.mxu0 0.0
    %191 = vmatprep.subr.mxu0 0.0
    %192 = vmatpush1.xpose.msra.mxu0 0.0
    %193 = vmatprep.subr.mxu0 0.0
    %194 = vmatpush1.xpose.msra.mxu0 0.0
    %195 = vmatprep.subr.mxu0 0.0
    %196 = vmatpush1.xpose.msra.mxu0 0.0
    %197 = vmatprep.subr.mxu0 0.0
    %198 = vmatpush1.xpose.msra.mxu0 0.0
    %199 = vmatprep.subr.mxu0 0.0
    %200 = vmatpush1.xpose.msra.mxu0 0.0
    %201 = vmatprep.subr.mxu0 0.0
    %202 = vmatpush1.xpose.msra.mxu0 0.0
    %203 = vmatprep.subr.mxu0 0.0
    %204 = vmatpush1.xpose.msra.mxu0 0.0
    %205 = vmatprep.subr.mxu0 0.0
    %206 = vmatpush1.xpose.msra.mxu0 0.0
    %207 = vmatprep.subr.mxu0 0.0
    %208 = vmatpush1.xpose.msra.mxu0 0.0
    %209 = vmatprep.subr.mxu0 0.0
    %210 = vmatpush1.xpose.msra.mxu0 0.0
    %211 = vmatprep.subr.mxu0 0.0
    %212 = vmatpush1.xpose.msra.mxu0 0.0
    %213 = vmatprep.subr.mxu0 0.0
    %214 = vmatpush1.xpose.msra.mxu0 0.0
    %215 = vmatprep.mubr.f32.mxu0 0.0
    %216 = vmatmul.mubr.f32.gmra.mrb[0].mxu0 %v146
    %v217 = vpop.f32.mrb[0].mxu0
    %v218 = vadd.f32 %v144, %v217
    %v219 = vpop.f32.mrb[0].mxu0
    %220 = vdwg.mxu0
    %vm221 = vcmask 57344
    %222 = vst.msk [vmem:[#allocation8] sm:$0x1] %vm221, %v218
    // Predicated region
    $region34: #{critic_forward.1} parent=1 // pred_check
      _
    $region35: #{critic_forward.1} parent=1 // pred_check_branch
      %224 = sbr.rel (0) target = $region37
    $region36: #{critic_forward.1} parent=1 // pred_region
      %s226 = ssub.s32 16, 16
      %227 = vsyncadd [#allocation5], %s226
      %s229 = sshll.u32 [#allocation8], 4
      %s230 = int_to_ptr.vmem [resolvable:$true] %s229
      %232 = dma.vmem_to_hbm [thread:$0]  %s230, 16, %s6, [#allocation5]
    $region37: #{critic_forward.1} parent=1 // pred_fallthru
      _
    // Predicated region
    $region38: #{critic_forward.1} parent=1 // pred_check
      _
    $region39: #{critic_forward.1} parent=1 // pred_check_branch
      %234 = sbr.rel (0) target = $region41
    $region40: #{critic_forward.1} parent=1 // pred_region
      %235 = dma.done [#allocation5], 16
    $region41: #{critic_forward.1} parent=1 // pred_fallthru
      _
    %236 = vsyncpa [#allocation4], 1
    %237 = vsyncpa [#allocation7], 1
    %238 = vsyncpa [#allocation5], 1

</llo_original>
